<compile_context>
chip_gen: v7x
topology: tpu7x:2x2x1
jax: 0.10.0
libtpu: 0.0.40
codegen_flags: <defaults>
</compile_context>

<pallas_src>
import jax
import jax.numpy as jnp
from jax.experimental import pallas as pl
from jax.experimental.pallas import tpu as pltpu


def _linear_attn_kernel(q_ref, mask_ref, w_ref, out_ref):
    # q_ref:    (tb, T, D)  VMEM  question tile (input dtype)
    # mask_ref: (tb, 1, T)  VMEM  (0 => masked out)
    # w_ref:    (1, D)      VMEM  Linear weight row, resident for whole grid
    # out_ref:  (tb, 1, T)  VMEM  softmax over T
    tb, _, d = q_ref.shape

    # Linear(D -> 1) on the MXU: batched (tb,1,D) x (tb,T,D) -> (tb,1,T),
    # contracting D, accumulating in f32.  With bf16 inputs this uses the
    # native bf16 MXU path (no per-element upconvert on the VPU).
    w = jnp.broadcast_to(w_ref[...].astype(q_ref.dtype)[None], (tb, 1, d))
    scores = jax.lax.dot_general(
        w, q_ref[...],
        dimension_numbers=(((2,), (2,)), ((0,), (0,))),
        preferred_element_type=jnp.float32,
    )                                                    # (tb, 1, T), f32

    # Bias intentionally omitted: softmax over T is shift-invariant.

    # masked_fill(mask == 0, -inf); fully-masked rows yield NaN (PyTorch
    # masked_fill + softmax semantics).
    masked = jnp.where(mask_ref[...] == 0, -jnp.inf, scores)

    # Softmax over T (lane axis).  Exact division so rows sum to 1.
    row_max = jnp.max(masked, axis=-1, keepdims=True)
    e = jnp.exp(masked - row_max)
    denom = jnp.sum(e, axis=-1, keepdims=True)
    out_ref[...] = (e / denom).astype(out_ref.dtype)


def _vmem_capacity_bytes(default=64 * 1024 * 1024):
    """Physical VMEM of the current chip; conservative default if unknown."""
    try:
        return int(pltpu.get_tpu_info().vmem_capacity_bytes)
    except Exception:  # e.g. interpret mode / no TPU info available
        return default


def _pick_batch_tile(B, T, D, itemsize, target_bytes):
    """Batch tile: ~target_bytes of question per step, but >= ~8 grid steps."""
    per_row = max(T * D * itemsize, 1)
    tb = max(1, int(target_bytes // per_row))
    # Prefer >= 8 grid steps when B allows: both v7x TensorCores get work and
    # the 2-deep pipeline has enough steps to hide prologue/epilogue DMA.
    tb = min(tb, max(1, pl.cdiv(B, 8)))
    if tb >= B:
        return B
    if tb > 8:
        tb = (tb // 8) * 8          # keep tiles evenly sized / 8-aligned
    return max(1, min(tb, B))


def linear_attention(question, question_mask, weight, bias=None):
    """question: (B, T, D); question_mask: (B, T); weight: (1, D); bias: (1,).

    Returns alpha: (B, T).  `bias` is accepted for API parity with the
    PyTorch module but is not needed: softmax is shift-invariant.
    """
    del bias
    B, T, D = question.shape

    # Generation-aware tile / VMEM budget (2x tile double-buffered + small
    # f32 score / mask / output blocks).
    cap = _vmem_capacity_bytes()
    if cap >= 96 * 1024 * 1024:           # v5e / v6e: 128 MiB physical VMEM
        target_bytes = 12 * 1024 * 1024
        vmem_limit = 64 * 1024 * 1024
    else:                                  # v7x-class: 64 MiB physical VMEM
        target_bytes = 8 * 1024 * 1024
        vmem_limit = 44 * 1024 * 1024

    tb = _pick_batch_tile(B, T, D, question.dtype.itemsize, target_bytes)
    grid = (pl.cdiv(B, tb),)

    # Free metadata reshape: carry mask / output as (B, 1, T) so the kernel's
    # (tb,1,T) score layout (T on lanes) matches them with no relayout.
    mask3 = question_mask.reshape(B, 1, T)

    out = pl.pallas_call(
        _linear_attn_kernel,
        out_shape=jax.ShapeDtypeStruct((B, 1, T), question.dtype),
        grid=grid,
        in_specs=[
            # question: tiled over batch, auto double-buffered.
            pl.BlockSpec((tb, T, D), lambda i: (i, 0, 0)),
            # mask: tiled over batch alongside question (any dtype works).
            pl.BlockSpec((tb, 1, T), lambda i: (i, 0, 0)),
            # weight row: small, resident in VMEM for the whole grid.
            pl.BlockSpec(memory_space=pltpu.MemorySpace.VMEM),
        ],
        out_specs=pl.BlockSpec((tb, 1, T), lambda i: (i, 0, 0)),
        compiler_params=pltpu.CompilerParams(
            dimension_semantics=("parallel",),   # shard batch across TCs (v7x)
            vmem_limit_bytes=vmem_limit,
        ),
    )(question, mask3, weight)

    return out.reshape(B, T)


def _reference(question, question_mask, weight, bias):
    scores = jnp.einsum("btd,od->bt", question, weight) + bias[0]
    scores = jnp.where(question_mask == 0, -jnp.inf, scores)
    return jax.nn.softmax(scores, axis=1)


if __name__ == "__main__":
    B, T, D = 2, 8, 32
    key = jax.random.PRNGKey(0)
    k_q, k_w, k_b = jax.random.split(key, 3)

    question = jax.random.normal(k_q, (B, T, D), dtype=jnp.float32)

    # Padding mask: row 0 fully valid, row 1 valid for first 5 positions.
    lengths = jnp.array([T, 5], dtype=jnp.int32)
    question_mask = (
        jnp.arange(T, dtype=jnp.int32)[None, :] < lengths[:, None]
    ).astype(jnp.float32)

    # Deterministic nn.Linear(D, 1)-style init (uniform +/- 1/sqrt(D)).
    bound = 1.0 / (D ** 0.5)
    weight = jax.random.uniform(k_w, (1, D), jnp.float32, -bound, bound)
    bias = jax.random.uniform(k_b, (1,), jnp.float32, -bound, bound)

    alpha = linear_attention(question, question_mask, weight, bias)
    alpha = jax.block_until_ready(alpha)

    ref = _reference(question, question_mask, weight, bias)
    assert alpha.shape == (B, T)
    # Element-wise match (tolerance covers TPU default f32 matmul precision).
    assert jnp.allclose(alpha, ref, atol=2e-3, rtol=2e-3)
    # Exact normalization: rows sum to 1 to f32 rounding.
    assert jnp.allclose(jnp.sum(alpha, axis=1), jnp.ones((B,)), atol=1e-5)

    print("KERNEL_OK")
</pallas_src>

<mosaic_0001>
module attributes {stable_mosaic.version = 11 : i64} {
  func.func @_linear_attn_kernel(%arg0: i32, %arg1: memref<1x8x32xf32, #tpu.memory_space<vmem>>, %arg2: memref<1x1x8xf32, #tpu.memory_space<vmem>>, %arg3: memref<1x32xf32, #tpu.memory_space<vmem>>, %arg4: memref<1x1x8xf32, #tpu.memory_space<vmem>>) attributes {dimension_semantics = [#tpu.dimension_semantics<parallel>], iteration_bounds = array<i64: 2>, scalar_prefetch = 0 : i64, scratch_operands = 0 : i64, tpu.core_type = #tpu.core_type<tc>, window_params = [{transform_indices = @transform_0, window_bounds = array<i64: 1, 8, 32>}, {transform_indices = @transform_1, window_bounds = array<i64: 1, 1, 8>}, {pipeline_mode = #tpu.pipeline_mode<synchronous>, transform_indices = @transform_2, window_bounds = array<i64: 1, 32>}, {transform_indices = @transform_3, window_bounds = array<i64: 1, 1, 8>}]} {
    %c0 = arith.constant 0 : index
    %c0_0 = arith.constant 0 : index
    %0 = vector.load %arg3[%c0, %c0_0] : memref<1x32xf32, #tpu.memory_space<vmem>>, vector<1x32xf32>
    %1 = vector.shape_cast %0 : vector<1x32xf32> to vector<1x1x32xf32>
    %c0_1 = arith.constant 0 : index
    %c0_2 = arith.constant 0 : index
    %c0_3 = arith.constant 0 : index
    %2 = vector.load %arg1[%c0_1, %c0_2, %c0_3] : memref<1x8x32xf32, #tpu.memory_space<vmem>>, vector<1x8x32xf32>
    %cst = arith.constant dense<0.000000e+00> : vector<1x1x8xf32>
    %3 = tpu.matmul %1, %2, %cst {dimension_numbers = #tpu.dot_dimension_numbers<[2], [2], [1], [1], [0, 0, 0, 1, 1, 1], [0], [0]>} : vector<1x1x32xf32>, vector<1x8x32xf32>, vector<1x1x8xf32> -> vector<1x1x8xf32>
    %c0_4 = arith.constant 0 : index
    %c0_5 = arith.constant 0 : index
    %c0_6 = arith.constant 0 : index
    %4 = vector.load %arg2[%c0_4, %c0_5, %c0_6] : memref<1x1x8xf32, #tpu.memory_space<vmem>>, vector<1x1x8xf32>
    %cst_7 = arith.constant 0.000000e+00 : f32
    %5 = vector.broadcast %cst_7 : f32 to vector<1x1x8xf32>
    %6 = arith.cmpf oeq, %4, %5 : vector<1x1x8xf32>
    %cst_8 = arith.constant 0xFF800000 : f32
    %7 = vector.broadcast %cst_8 : f32 to vector<1x1x8xf32>
    %8 = arith.select %6, %7, %3 : vector<1x1x8xi1>, vector<1x1x8xf32>
    %cst_9 = arith.constant dense<0xFF800000> : vector<1x1xf32>
    %9 = vector.multi_reduction <maximumf>, %8, %cst_9 [2] : vector<1x1x8xf32> to vector<1x1xf32>
    %10 = vector.shape_cast %9 : vector<1x1xf32> to vector<1x1x1xf32>
    %11 = vector.broadcast %10 : vector<1x1x1xf32> to vector<1x1x8xf32>
    %12 = arith.subf %8, %11 : vector<1x1x8xf32>
    %13 = math.exp %12 : vector<1x1x8xf32>
    %cst_10 = arith.constant dense<0.000000e+00> : vector<1x1xf32>
    %14 = vector.multi_reduction <add>, %13, %cst_10 [2] : vector<1x1x8xf32> to vector<1x1xf32>
    %15 = vector.shape_cast %14 : vector<1x1xf32> to vector<1x1x1xf32>
    %16 = vector.broadcast %15 : vector<1x1x1xf32> to vector<1x1x8xf32>
    %17 = arith.divf %13, %16 : vector<1x1x8xf32>
    %c0_11 = arith.constant 0 : index
    %c0_12 = arith.constant 0 : index
    %c0_13 = arith.constant 0 : index
    %18 = vector.load %arg4[%c0_11, %c0_12, %c0_13] : memref<1x1x8xf32, #tpu.memory_space<vmem>>, vector<1x1x8xf32>
    tpu.vector_store %arg4[%c0_11, %c0_12, %c0_13], %17 {strides = array<i32>} : memref<1x1x8xf32, #tpu.memory_space<vmem>>, vector<1x1x8xf32>,
    return
  }
  func.func @transform_0(%arg0: i32) -> (i32, i32, i32) {
    %c0_i32 = arith.constant 0 : i32
    %c0_i32_0 = arith.constant 0 : i32
    %c0_i32_1 = arith.constant 0 : i32
    return %arg0, %c0_i32, %c0_i32_0 : i32, i32, i32
  }
  func.func @transform_1(%arg0: i32) -> (i32, i32, i32) {
    %c0_i32 = arith.constant 0 : i32
    %c0_i32_0 = arith.constant 0 : i32
    %c0_i32_1 = arith.constant 0 : i32
    return %arg0, %c0_i32, %c0_i32_0 : i32, i32, i32
  }
  func.func @transform_2(%arg0: i32) -> (i32, i32) {
    %c0_i32 = arith.constant 0 : i32
    %c0_i32_0 = arith.constant 0 : i32
    %c0_i32_1 = arith.constant 0 : i32
    return %c0_i32, %c0_i32_0 : i32, i32
  }
  func.func @transform_3(%arg0: i32) -> (i32, i32, i32) {
    %c0_i32 = arith.constant 0 : i32
    %c0_i32_0 = arith.constant 0 : i32
    %c0_i32_1 = arith.constant 0 : i32
    return %arg0, %c0_i32, %c0_i32_0 : i32, i32, i32
  }
}

</mosaic_0001>

<llo_original>
// kernel: tpu_custom_call.1
$region0: #{tpu_custom_call.1}
  #allocation0 [shape = 'u32[]', space=smem, size = 0x4, offset = 0x4, fixed_abs, tag = 'smem constant byte address 0x4 - core index']
  #allocation1 [shape = 'u32[144,128]{1,0:T(1,128)}', space=vmem, size = 0x12000, scoped, tag = 'internal scratch']
  %s0 = inlined_call_operand.hbm [shape: f32[2,8,32], index: 0, kind: input, shape index: {}]
  %s1 = inlined_call_operand.vmem [shape: f32[2,1,8], index: 1, kind: input, shape index: {}]
  %s2 = inlined_call_operand.vmem [shape: f32[1,32], index: 2, kind: input, shape index: {}]
  %s3 = inlined_call_operand.hbm [shape: f32[2,1,8], index: 3, kind: output, shape index: {}]
  %s4 = sld [smem:[#allocation0]]
  $region49: #{tpu_custom_call.1} parent=0
    _
  %s6 = ssub.s32 1, %s4
  %s7 = scalar_select 0, %s6, %s4
  $region1: #{tpu_custom_call.1} parent=0
    #allocation2 [shape = 'u8[8192]{0}', space=vmem, size = 0x2000, scoped, tag = 'input window, operand 0']
    #allocation3 [shape = 's32[2]{0}', space=sflag, size = 0x8, scoped, tag = 'scoped memory for tpu_custom_call.1']
    #allocation4 [shape = 's32[2]{0}', space=sflag, size = 0x8, scoped, tag = 'scoped memory for tpu_custom_call.1']
    #allocation5 [shape = 'u8[1024]{0}', space=vmem, size = 0x400, scoped, tag = 'output window, operand 0']
    %8 = vsyncpa [#allocation3], 0
    %s9 = scalar_lea.sflag [#allocation3], 1
    %10 = vsyncpa %s9, 0
    %11 = vsyncpa [#allocation4], 0
    %s12 = scalar_lea.sflag [#allocation4], 1
    %13 = vsyncpa %s12, 0
    loop: start=0, step=1, limit=4
    $region2: #{tpu_custom_call.1} parent=1 // loop_pre_header
      _
    $region3: #{tpu_custom_call.1} parent=1 // loop_header
      %s15 = sphi 0, %s19
      %p16 = scmp.ge.s32.totalorder %s15, 4
      %s25 = sphi 0, %s27
      %s28 = sphi 0, %s25
      %s29 = sphi 0, %s28
      %s45 = sphi 0, %s29
      %s51 = sphi 0, %s53
      %s54 = sphi 0, %s51
      %s55 = sphi 0, %s54
      %s71 = sphi 0, %s55
      %s75 = sphi 0, %s75
      %s77 = sphi 0, %s75
      %s78 = sphi 0, %s77
      %s92 = sphi 0, %s78
      %s98 = sphi 0, %s100
      %s101 = sphi 0, %s98
      %s102 = sphi 0, %s101
      %s118 = sphi 0, %s102
    $region4: #{tpu_custom_call.1} parent=1 // loop_header_branch
      %18 = sbr.rel (%p16) target = $region8
    $region5: #{tpu_custom_call.1} parent=1 // loop_body
      %s20 = ssub.s32 %s15, 1
      %s21 = ssub.s32 %s15, 2
      %s22 = sadd.s32 %s15, 1
      %s23 = ssub.s32 %s15, %s22
      %p24 = scmp.eq.s32.totalorder %s23, 0
      %s26 = sadd.s32 %s25, 1
      %s27 = scalar_select %p24, %s25, %s26
      %p30 = pneg %p24
      %p31 = scmp.eq.s32.totalorder %s15, 1
      %p32 = por %p30, %p31
      %p33 = scmp.ne.s32.totalorder %s25, %s28
      %p34 = scmp.eq.s32.totalorder %s15, 0
      %p35 = por %p33, %p34
      %p36 = scmp.ne.s32.totalorder %s25, %s28
      %p37 = scmp.eq.s32.totalorder %s20, 1
      %p38 = por %p36, %p37
      %p39 = scmp.ne.s32.totalorder %s28, %s29
      %p40 = scmp.eq.s32.totalorder %s20, 0
      %p41 = por %p39, %p40
      %p42 = scmp.ne.s32.totalorder %s28, %s29
      %p43 = scmp.eq.s32.totalorder %s21, 1
      %p44 = por %p42, %p43
      %p46 = scmp.ne.s32.totalorder %s29, %s45
      %p47 = scmp.eq.s32.totalorder %s21, 0
      %p48 = por %p46, %p47
      %s49 = ssub.s32 %s15, %s22
      %p50 = scmp.eq.s32.totalorder %s49, 0
      %s52 = sadd.s32 %s51, 1
      %s53 = scalar_select %p50, %s51, %s52
      %p56 = pneg %p50
      %p57 = scmp.eq.s32.totalorder %s15, 1
      %p58 = por %p56, %p57
      %p59 = scmp.ne.s32.totalorder %s51, %s54
      %p60 = scmp.eq.s32.totalorder %s15, 0
      %p61 = por %p59, %p60
      %p62 = scmp.ne.s32.totalorder %s51, %s54
      %p63 = scmp.eq.s32.totalorder %s20, 1
      %p64 = por %p62, %p63
      %p65 = scmp.ne.s32.totalorder %s54, %s55
      %p66 = scmp.eq.s32.totalorder %s20, 0
      %p67 = por %p65, %p66
      %p68 = scmp.ne.s32.totalorder %s54, %s55
      %p69 = scmp.eq.s32.totalorder %s21, 1
      %p70 = por %p68, %p69
      %p72 = scmp.ne.s32.totalorder %s55, %s71
      %p73 = scmp.eq.s32.totalorder %s21, 0
      %p74 = por %p72, %p73
      %s76 = sadd.s32 %s75, 1
      %p79 = scmp.eq.s32.totalorder %s15, 1
      %p80 = scmp.ne.s32.totalorder %s75, %s77
      %p81 = scmp.eq.s32.totalorder %s15, 0
      %p82 = por %p80, %p81
      %p83 = scmp.ne.s32.totalorder %s75, %s77
      %p84 = scmp.eq.s32.totalorder %s20, 1
      %p85 = por %p83, %p84
      %p86 = scmp.ne.s32.totalorder %s77, %s78
      %p87 = scmp.eq.s32.totalorder %s20, 0
      %p88 = por %p86, %p87
      %p89 = scmp.ne.s32.totalorder %s77, %s78
      %p90 = scmp.eq.s32.totalorder %s21, 1
      %p91 = por %p89, %p90
      %p93 = scmp.ne.s32.totalorder %s78, %s92
      %p94 = scmp.eq.s32.totalorder %s21, 0
      %p95 = por %p93, %p94
      %s96 = ssub.s32 %s15, %s22
      %p97 = scmp.eq.s32.totalorder %s96, 0
      %s99 = sadd.s32 %s98, 1
      %s100 = scalar_select %p97, %s98, %s99
      %p103 = pneg %p97
      %p104 = scmp.eq.s32.totalorder %s15, 1
      %p105 = por %p103, %p104
      %p106 = scmp.ne.s32.totalorder %s98, %s101
      %p107 = scmp.eq.s32.totalorder %s15, 0
      %p108 = por %p106, %p107
      %p109 = scmp.ne.s32.totalorder %s98, %s101
      %p110 = scmp.eq.s32.totalorder %s20, 1
      %p111 = por %p109, %p110
      %p112 = scmp.ne.s32.totalorder %s101, %s102
      %p113 = scmp.eq.s32.totalorder %s20, 0
      %p114 = por %p112, %p113
      %p115 = scmp.ne.s32.totalorder %s101, %s102
      %p116 = scmp.eq.s32.totalorder %s21, 1
      %p117 = por %p115, %p116
      %p119 = scmp.ne.s32.totalorder %s102, %s118
      %p120 = scmp.eq.s32.totalorder %s21, 0
      %p121 = por %p119, %p120
      %p122 = scmp.le.s32.totalorder 1, %s15
      %p123 = scmp.lt.s32.totalorder %s15, 3
      %p124 = pnand %p122, %p123
      %p125 = pneg %p124
      // Predicated region
      $region9: #{tpu_custom_call.1} parent=5 // pred_check
        _
      $region10: #{tpu_custom_call.1} parent=5 // pred_check_branch
        %127 = sbr.rel (%p124) target = $region12
      $region11: #{tpu_custom_call.1} parent=5 // pred_region
        %s128 = ssub.s32 %s15, 1
        // Predicated region
        $region13: #{tpu_custom_call.1} parent=11 // pred_check
          %p129 = pneg %p88
        $region14: #{tpu_custom_call.1} parent=11 // pred_check_branch
          %131 = sbr.rel (%p129) target = $region16
        $region15: #{tpu_custom_call.1} parent=11 // pred_region
          _
        $region16: #{tpu_custom_call.1} parent=11 // pred_fallthru
          _
      $region12: #{tpu_custom_call.1} parent=5 // pred_fallthru
        _
      %p132 = scmp.lt.s32.totalorder %s15, 2
      // Predicated region
      $region17: #{tpu_custom_call.1} parent=5 // pred_check
        %p133 = pneg %p132
      $region18: #{tpu_custom_call.1} parent=5 // pred_check_branch
        %135 = sbr.rel (%p133) target = $region20
      $region19: #{tpu_custom_call.1} parent=5 // pred_region
        // Predicated region
        $region21: #{tpu_custom_call.1} parent=19 // pred_check
          %p136 = pneg %p35
        $region22: #{tpu_custom_call.1} parent=19 // pred_check_branch
          %138 = sbr.rel (%p136) target = $region24
        $region23: #{tpu_custom_call.1} parent=19 // pred_region
          %s139 = sand.u32 %s25, 1
          %s140 = scalar_lea.sflag [#allocation3], %s139
          %s141 = sand.u32 %s25, 1
          %s142 = smul.addr %s141, 8
          %s143 = scalar_lea.vmem [#allocation2], %s142
          %s145 = ssub.s32 128, 128
          %146 = vsyncadd %s140, %s145
          %s147 = smul.addr %s15, 128
          %s148 = scalar_lea.hbm %s0, %s147
          %s150 = sshll.u32 %s143, 4
          %s151 = int_to_ptr.vmem [resolvable:$true] %s150
          %153 = dma.hbm_to_vmem [thread:$0]  %s148, 128, %s151, %s140
        $region24: #{tpu_custom_call.1} parent=19 // pred_fallthru
          _
        // Predicated region
        $region25: #{tpu_custom_call.1} parent=19 // pred_check
          %p154 = pneg %p61
        $region26: #{tpu_custom_call.1} parent=19 // pred_check_branch
          %156 = sbr.rel (%p154) target = $region28
        $region27: #{tpu_custom_call.1} parent=19 // pred_region
          %p157 = scmp.lt.s32.totalorder %s15, 1
          %s158 = scalar_select %p157, %s15, 1
          %s159 = scalar_lea.vmem %s1, %s158
        $region28: #{tpu_custom_call.1} parent=19 // pred_fallthru
          _
      $region20: #{tpu_custom_call.1} parent=5 // pred_fallthru
        _
      %p160 = scmp.le.s32.totalorder 1, %s15
      %p161 = scmp.lt.s32.totalorder %s15, 3
      %p162 = pnand %p160, %p161
      %p163 = pneg %p162
      // Predicated region
      $region29: #{tpu_custom_call.1} parent=5 // pred_check
        _
      $region30: #{tpu_custom_call.1} parent=5 // pred_check_branch
        %165 = sbr.rel (%p162) target = $region32
      $region31: #{tpu_custom_call.1} parent=5 // pred_region
        %s166 = ssub.s32 %s15, 1
        %s167 = sand.u32 %s28, 1
        %s168 = scalar_lea.sflag [#allocation3], %s167
        %s169 = sand.u32 %s28, 1
        %s170 = smul.addr %s169, 8
        %s171 = scalar_lea.vmem [#allocation2], %s170
        // Predicated region
        $region33: #{tpu_custom_call.1} parent=31 // pred_check
          %p172 = pneg %p41
        $region34: #{tpu_custom_call.1} parent=31 // pred_check_branch
          %174 = sbr.rel (%p172) target = $region36
        $region35: #{tpu_custom_call.1} parent=31 // pred_region
          %175 = dma.done %s168, 128
        $region36: #{tpu_custom_call.1} parent=31 // pred_fallthru
          _
        %s176 = sand.u32 %s28, 1
        %s177 = scalar_lea.sflag [#allocation3], %s176
        %s178 = sand.u32 %s28, 1
        %s179 = smul.addr %s178, 8
        %s180 = scalar_lea.vmem [#allocation2], %s179
        %p181 = pneg %p41
        %p182 = pneg %p38
        %p183 = scmp.lt.s32.totalorder %s20, 1
        %s184 = scalar_select %p183, %s20, 1
        %s185 = scalar_lea.vmem %s1, %s184
        %p186 = pneg %p67
        %p187 = pneg %p64
        %p188 = pneg %p88
        %p189 = pneg %p85
        %p190 = pneg %p114
        %p191 = pneg %p111
        %s192 = sand.u32 %s101, 1
        %s193 = scalar_lea.sflag [#allocation4], %s192
        %s194 = sand.u32 %s101, 1
        %s195 = scalar_lea.vmem [#allocation5], %s194
        %p196 = scmp.lt.s32.totalorder %s20, 1
        %s197 = scalar_select %p196, %s20, 1
        %s198 = scalar_lea.vmem %s1, %s197
        %v199 = vld [vmem:[%s2] sm:$0x1]
        %v200 = vld [vmem:[%s171] sm:$0xff]
        %vm201 = vcmask 261120
        %v203 = vsel %vm201, %v199, 0
        %v206 = vsel %vm201, %v200, 0
        %208 = vmatprep.subr.mxu0 0.0
        %209 = vmatpush1.xpose.msra.mxu0 %v206
        %210 = vmatprep.subr.mxu0 0.0
        %211 = vmatpush1.xpose.msra.mxu0 0.0
        %212 = vmatprep.subr.mxu0 0.0
        %213 = vmatpush1.xpose.msra.mxu0 0.0
        %214 = vmatprep.subr.mxu0 0.0
        %215 = vmatpush1.xpose.msra.mxu0 0.0
        %216 = vmatprep.subr.mxu0 0.0
        %217 = vmatpush1.xpose.msra.mxu0 0.0
        %218 = vmatprep.subr.mxu0 0.0
        %219 = vmatpush1.xpose.msra.mxu0 0.0
        %220 = vmatprep.subr.mxu0 0.0
        %221 = vmatpush1.xpose.msra.mxu0 0.0
        %222 = vmatprep.subr.mxu0 0.0
        %223 = vmatpush1.xpose.msra.mxu0 0.0
        %224 = vmatprep.subr.mxu0 0.0
        %225 = vmatpush1.xpose.msra.mxu0 0.0
        %226 = vmatprep.subr.mxu0 0.0
        %227 = vmatpush1.xpose.msra.mxu0 0.0
        %228 = vmatprep.subr.mxu0 0.0
        %229 = vmatpush1.xpose.msra.mxu0 0.0
        %230 = vmatprep.subr.mxu0 0.0
        %231 = vmatpush1.xpose.msra.mxu0 0.0
        %232 = vmatprep.subr.mxu0 0.0
        %233 = vmatpush1.xpose.msra.mxu0 0.0
        %234 = vmatprep.subr.mxu0 0.0
        %235 = vmatpush1.xpose.msra.mxu0 0.0
        %236 = vmatprep.subr.mxu0 0.0
        %237 = vmatpush1.xpose.msra.mxu0 0.0
        %238 = vmatprep.subr.mxu0 0.0
        %239 = vmatpush1.xpose.msra.mxu0 0.0
        %240 = vmatprep.subr.mxu0 0.0
        %241 = vmatpush1.xpose.msra.mxu0 0.0
        %242 = vmatprep.subr.mxu0 0.0
        %243 = vmatpush1.xpose.msra.mxu0 0.0
        %244 = vmatprep.subr.mxu0 0.0
        %245 = vmatpush1.xpose.msra.mxu0 0.0
        %246 = vmatprep.subr.mxu0 0.0
        %247 = vmatpush1.xpose.msra.mxu0 0.0
        %248 = vmatprep.subr.mxu0 0.0
        %249 = vmatpush1.xpose.msra.mxu0 0.0
        %250 = vmatprep.subr.mxu0 0.0
        %251 = vmatpush1.xpose.msra.mxu0 0.0
        %252 = vmatprep.subr.mxu0 0.0
        %253 = vmatpush1.xpose.msra.mxu0 0.0
        %254 = vmatprep.subr.mxu0 0.0
        %255 = vmatpush1.xpose.msra.mxu0 0.0
        %256 = vmatprep.subr.mxu0 0.0
        %257 = vmatpush1.xpose.msra.mxu0 0.0
        %258 = vmatprep.subr.mxu0 0.0
        %259 = vmatpush1.xpose.msra.mxu0 0.0
        %260 = vmatprep.subr.mxu0 0.0
        %261 = vmatpush1.xpose.msra.mxu0 0.0
        %262 = vmatprep.subr.mxu0 0.0
        %263 = vmatpush1.xpose.msra.mxu0 0.0
        %264 = vmatprep.subr.mxu0 0.0
        %265 = vmatpush1.xpose.msra.mxu0 0.0
        %266 = vmatprep.subr.mxu0 0.0
        %267 = vmatpush1.xpose.msra.mxu0 0.0
        %268 = vmatprep.subr.mxu0 0.0
        %269 = vmatpush1.xpose.msra.mxu0 0.0
        %270 = vmatprep.subr.mxu0 0.0
        %271 = vmatpush1.xpose.msra.mxu0 0.0
        %272 = vmatprep.mubr.f32.mxu0 0.0
        %273 = vmatmul.mubr.f32.gmra.mrb[0].mxu0 %v203
        %v274 = vpop.f32.mrb[0].mxu0
        %v275 = vadd.f32 0.0, %v274
        %v276 = vpop.f32.mrb[0].mxu0
        %277 = vdwg.mxu0
        %v278 = vld [vmem:[%s198] sm:$0x1]
        %vm279 = vcmp.eq.f32.partialorder %v278, 0.0
        %v280 = vsel %vm279, -inf, %v275
        %vm281 = vcmask 57344
        %v282 = vsel %vm281, %v280, -inf
        %283 = vmax.xlane.f32.xlu0 %v282
        %v284 = vpop.xlane.xlu0 %283
        %v285 = vsub.f32 %v280, %v284
        %v286 = vmul.f32 %v285, 1.442695
        %v287 = vpow.pop %v286
        %v288 = vsel %vm281, %v287, 0.0
        %289 = vadd.xlane.f32.xlu0 %v288
        %v290 = vpop.xlane.xlu0 %289
        %v291 = vrcp.pop %v290
        %v292 = vmul.f32 %v287, %v291
        %293 = vst.msk [vmem:[%s195] sm:$0x1] %vm281, %v292
        %s294 = sand.u32 %s101, 1
        %s295 = scalar_lea.sflag [#allocation4], %s294
        %s296 = sand.u32 %s101, 1
        %s297 = scalar_lea.vmem [#allocation5], %s296
        // Predicated region
        $region37: #{tpu_custom_call.1} parent=31 // pred_check
          %p298 = pneg %p111
        $region38: #{tpu_custom_call.1} parent=31 // pred_check_branch
          %300 = sbr.rel (%p298) target = $region40
        $region39: #{tpu_custom_call.1} parent=31 // pred_region
          %s302 = ssub.s32 16, 16
          %303 = vsyncadd %s295, %s302
          %s304 = smul.addr %s20, 16
          %s305 = scalar_lea.hbm %s3, %s304
          %s307 = sshll.u32 %s297, 4
          %s308 = int_to_ptr.vmem [resolvable:$true] %s307
          %310 = dma.vmem_to_hbm [thread:$0]  %s308, 16, %s305, %s295
        $region40: #{tpu_custom_call.1} parent=31 // pred_fallthru
          _
      $region32: #{tpu_custom_call.1} parent=5 // pred_fallthru
        _
      %p311 = scmp.le.s32.totalorder 2, %s15
      // Predicated region
      $region41: #{tpu_custom_call.1} parent=5 // pred_check
        %p312 = pneg %p311
      $region42: #{tpu_custom_call.1} parent=5 // pred_check_branch
        %314 = sbr.rel (%p312) target = $region44
      $region43: #{tpu_custom_call.1} parent=5 // pred_region
        %s315 = ssub.s32 %s15, 2
        // Predicated region
        $region45: #{tpu_custom_call.1} parent=43 // pred_check
          %p316 = pneg %p117
        $region46: #{tpu_custom_call.1} parent=43 // pred_check_branch
          %318 = sbr.rel (%p316) target = $region48
        $region47: #{tpu_custom_call.1} parent=43 // pred_region
          %s319 = sand.u32 %s102, 1
          %s320 = scalar_lea.sflag [#allocation4], %s319
          %s321 = sand.u32 %s102, 1
          %s322 = scalar_lea.vmem [#allocation5], %s321
          %323 = dma.done %s320, 16
        $region48: #{tpu_custom_call.1} parent=43 // pred_fallthru
          _
      $region44: #{tpu_custom_call.1} parent=5 // pred_fallthru
        _
    $region6: #{tpu_custom_call.1} parent=1 // loop_footer
      %s19 = sadd.s32 1, %s15
    $region7: #{tpu_custom_call.1} parent=1 // loop_footer_branch
      %14 = sbr.rel target = $region3
    $region8: #{tpu_custom_call.1} parent=1 // loop_exit
      _
    %324 = vsyncpa [#allocation3], 1
    %s325 = scalar_lea.sflag [#allocation3], 1
    %326 = vsyncpa %s325, 1
    %327 = vsyncpa [#allocation4], 1
    %s328 = scalar_lea.sflag [#allocation4], 1
    %329 = vsyncpa %s328, 1

</llo_original>
